<compile_context>
chip_gen: v7x
topology: tpu7x:2x2x1
jax: 0.10.0
libtpu: 0.0.40
codegen_flags: <defaults>
</compile_context>

<pallas_src>
import functools
import math

import jax
import jax.numpy as jnp
from jax import lax
from jax.experimental import pallas as pl
from jax.experimental.pallas import tpu as pltpu


# ------------------------------ helpers -------------------------------------

def _pick_div(n, candidates):
    for c in candidates:
        if n % c == 0:
            return c
    return n


def _vmem_ceiling_bytes():
    """Generation-aware VMEM ceiling (leave headroom for Mosaic scratch)."""
    try:
        cap = int(pltpu.get_tpu_info().vmem_capacity_bytes)
    except Exception:
        cap = 64 << 20   # conservative: fits v7x's per-TC VMEM
    return max(cap - (8 << 20), 32 << 20)


def _clamp_vmem(est_bytes):
    return int(min(max(est_bytes, 32 << 20), _vmem_ceiling_bytes()))


# --------------------- row-tiled matmul: y = x @ W --------------------------

def _rowmm_kernel(x_ref, w_ref, o_ref):
    o_ref[0] = jnp.dot(x_ref[0], w_ref[...],
                       preferred_element_type=jnp.float32).astype(o_ref.dtype)


def _row_matmul(x, w, *, out_dtype, row_tile=None, col_tile=None):
    """(B, S, Din) @ (Din, Dout) -> (B, S, Dout), row/column tiled."""
    B, S, Din = x.shape
    Dw, Dout = w.shape
    assert Dw == Din
    TS = row_tile if row_tile is not None else (
        S if S <= 512 else _pick_div(S, (512, 256, 128)))
    TN = col_tile if col_tile is not None else (
        Dout if Dout <= 2048 else _pick_div(Dout, (2048, 1024, 512, 256)))
    assert S % TS == 0 and Dout % TN == 0
    nS, nN = S // TS, Dout // TN

    # Constant-index weight block -> single buffer (pure VMEM headroom).
    w_kwargs = {}
    w_bufs = 2
    if nN == 1:
        w_kwargs["pipeline_mode"] = pl.Buffered(1)
        w_bufs = 1

    isz = jnp.dtype(x.dtype).itemsize
    osz = jnp.dtype(out_dtype).itemsize
    est = (2 * TS * Din * isz + w_bufs * Din * TN * isz
           + 2 * TS * TN * osz + TS * TN * 4 + (4 << 20))

    return pl.pallas_call(
        _rowmm_kernel,
        out_shape=jax.ShapeDtypeStruct((B, S, Dout), out_dtype),
        grid_spec=pltpu.PrefetchScalarGridSpec(
            num_scalar_prefetch=0,
            # weight-column axis outermost -> each weight block stays resident
            # for all (batch, row-tile) steps before the next DMA.
            grid=(nN, B, nS),
            in_specs=[
                pl.BlockSpec((1, TS, Din), lambda ni, b, si: (b, si, 0)),
                pl.BlockSpec((Din, TN), lambda ni, b, si: (0, ni), **w_kwargs),
            ],
            out_specs=pl.BlockSpec((1, TS, TN), lambda ni, b, si: (b, si, ni)),
        ),
        compiler_params=pltpu.CompilerParams(
            dimension_semantics=("parallel", "parallel", "parallel"),
            vmem_limit_bytes=_clamp_vmem(est),
        ),
    )(x, w)


# ------------------------- flash attention kernel ---------------------------

def _flash_kernel(q_ref, k_ref, v_ref, o_ref, *, q_tile, d_k,
                  approx_recip, exp_dtype):
    TQ = TK = q_tile
    dk = d_k
    qi = pl.program_id(2)
    neg_big = -1e30  # finite: no inf-inf NaN risk in the online softmax

    # Fold 1/sqrt(d_k) into the Q tile once (saves a (TQ,TK) VPU mul per key tile).
    q = q_ref[0, 0] * (1.0 / math.sqrt(dk))                      # (TQ, dk)

    def kv(kt):
        ks = pl.multiple_of(kt * TK, TK)
        return (k_ref[0, 0, pl.ds(ks, TK), :],
                v_ref[0, 0, pl.ds(ks, TK), :])

    def scores(k_t):
        # contract last axes directly -> no k.T relayout; f32 accumulation
        return lax.dot_general(q, k_t, (((1,), (1,)), ((), ())),
                               preferred_element_type=jnp.float32)

    def update(s, v_t, carry):
        m_i, l_i, acc = carry
        m_new = jnp.maximum(m_i, s.max(axis=-1, keepdims=True))
        alpha = jnp.exp((m_i - m_new).astype(exp_dtype)).astype(jnp.float32)
        p = jnp.exp((s - m_new).astype(exp_dtype))
        l_new = alpha * l_i + p.astype(jnp.float32).sum(axis=-1, keepdims=True)
        acc_new = alpha * acc + jnp.dot(p.astype(v_t.dtype), v_t,
                                        preferred_element_type=jnp.float32)
        return m_new, l_new, acc_new

    def body(kt, carry):
        k_t, v_t = kv(kt)
        return update(scores(k_t), v_t, carry)                    # no mask needed

    init = (jnp.full((TQ, 1), neg_big, jnp.float32),
            jnp.zeros((TQ, 1), jnp.float32),
            jnp.zeros((TQ, dk), jnp.float32))

    # Off-diagonal, fully visible key tiles kt in [0, qi); tiles past the
    # diagonal are never touched (causal block skipping).
    m_i, l_i, acc = lax.fori_loop(0, qi, body, init)

    # Diagonal tile: the only one needing the causal mask (built once here).
    k_t, v_t = kv(qi)
    s = scores(k_t)
    row = lax.broadcasted_iota(jnp.int32, (TQ, TK), 0)
    col = lax.broadcasted_iota(jnp.int32, (TQ, TK), 1)
    s = jnp.where(col <= row, s, neg_big)
    m_i, l_i, acc = update(s, v_t, (m_i, l_i, acc))

    out = acc * pl.reciprocal(l_i, approx=approx_recip)           # (TQ, dk) f32
    o_ref[0, 0] = out.astype(o_ref.dtype)


def _flash_attention(q, k, v, *, q_tile, approx_recip, exp_dtype):
    """q, k, v: (B, H, S, d_k) -> attention output (B, H, S, d_k)."""
    B, H, S, dk = q.shape
    assert S % q_tile == 0
    nq = S // q_tile
    cdt = q.dtype
    isz = jnp.dtype(cdt).itemsize

    kernel = functools.partial(_flash_kernel, q_tile=q_tile, d_k=dk,
                               approx_recip=approx_recip, exp_dtype=exp_dtype)

    est = (2 * q_tile * dk * isz          # Q tiles (double-buffered)
           + 2 * 2 * S * dk * isz         # K, V per-head slabs (double-buffered)
           + 2 * q_tile * dk * isz        # output tiles
           + 4 * q_tile * q_tile * 4      # in-kernel f32 score/prob temporaries
           + (4 << 20))

    return pl.pallas_call(
        kernel,
        out_shape=jax.ShapeDtypeStruct((B, H, S, dk), cdt),
        grid_spec=pltpu.PrefetchScalarGridSpec(
            num_scalar_prefetch=0,
            grid=(B, H, nq),
            in_specs=[
                pl.BlockSpec((1, 1, q_tile, dk), lambda b, h, qi: (b, h, qi, 0)),
                # K/V: block index constant across the innermost q-tile axis ->
                # DMA'd once per (batch, head) and kept resident.
                pl.BlockSpec((1, 1, S, dk), lambda b, h, qi: (b, h, 0, 0)),
                pl.BlockSpec((1, 1, S, dk), lambda b, h, qi: (b, h, 0, 0)),
            ],
            out_specs=pl.BlockSpec((1, 1, q_tile, dk),
                                   lambda b, h, qi: (b, h, qi, 0)),
        ),
        compiler_params=pltpu.CompilerParams(
            # Every output block is written exactly once -> all axes parallel
            # (both v7x TensorCores get work even at batch 1).
            dimension_semantics=("parallel", "parallel", "parallel"),
            vmem_limit_bytes=_clamp_vmem(est),
        ),
    )(q, k, v)


# ------------------------------ public API ----------------------------------

def prepare_mhsa_params(w_qkv, w_o, *, compute_dtype=jnp.bfloat16):
    """One-time weight prep (outside the per-call path): transpose to
    y = x @ W layout and cast to the MXU compute dtype."""
    d_model = w_o.shape[0]
    assert w_qkv.shape == (3 * d_model, d_model)
    assert w_o.shape == (d_model, d_model)
    wqkv_t = jnp.asarray(w_qkv).T.astype(compute_dtype)   # (D, 3D)
    wo_t = jnp.asarray(w_o).T.astype(compute_dtype)       # (D, D)
    return wqkv_t, wo_t


def _pick_q_tile(seq_len):
    if seq_len <= 256:
        return seq_len
    return _pick_div(seq_len, (256, 128))   # prefer 256/128 (review guidance)


def multi_head_self_attention(x, wqkv_t, wo_t, num_heads, *, q_tile=None,
                              approx_reciprocal=None, exp_dtype=None):
    """x: (B, S, D); wqkv_t: (D, 3D); wo_t: (D, D) (from prepare_mhsa_params)."""
    B, S, D = x.shape
    H = num_heads
    if D % H != 0:
        raise ValueError(f"d_model ({D}) must be divisible by num_heads ({H})")
    dk = D // H
    compute_dtype = wqkv_t.dtype
    out_dtype = x.dtype

    if q_tile is None:
        q_tile = _pick_q_tile(S)
    if S % q_tile != 0:
        raise ValueError(f"seq_len {S} must be divisible by q_tile {q_tile}")
    if approx_reciprocal is None:
        # EUP approx reciprocal only when inputs are already low precision.
        approx_reciprocal = compute_dtype != jnp.float32
    if exp_dtype is None:
        # f32 exp is correct & fast on v5e; pass jnp.bfloat16 on v6e/v7x to
        # halve EUP work in the inner loop.
        exp_dtype = jnp.float32

    xc = x.astype(compute_dtype)

    # 1) fused QKV projection, row-tiled (bounded f32 temp, no resident x).
    qkv = _row_matmul(xc, wqkv_t, out_dtype=compute_dtype)          # (B, S, 3D)

    # 2) head-grouped layout (plain XLA reshape/transpose outside kernels);
    #    qkv columns are ordered (stack, head, d_k) to match the module.
    q, k, v = jnp.split(qkv, 3, axis=-1)                            # (B, S, D) each

    def to_heads(t):
        return t.reshape(B, S, H, dk).transpose(0, 2, 1, 3)         # (B, H, S, dk)

    attn = _flash_attention(to_heads(q), to_heads(k), to_heads(v),
                            q_tile=q_tile, approx_recip=approx_reciprocal,
                            exp_dtype=exp_dtype)                    # (B, H, S, dk)

    # 3) concat heads + single wide output projection (K = D, full MXU cols).
    attn = attn.transpose(0, 2, 1, 3).reshape(B, S, D)
    return _row_matmul(attn, wo_t, out_dtype=out_dtype)             # (B, S, D)


# ------------------------------ reference -----------------------------------

def _reference(x, w_qkv, w_o, num_heads):
    """Pure-JAX reference mirroring the PyTorch forward (f32, highest precision)."""
    B, S, D = x.shape
    H = num_heads
    dk = D // H
    hp = lax.Precision.HIGHEST
    qkv = jnp.einsum("bsd,od->bso", x, w_qkv, precision=hp)          # (B, S, 3D)
    qkv = qkv.reshape(B, S, 3, H, dk)
    q = qkv[:, :, 0].transpose(0, 2, 1, 3)                           # (B, H, S, dk)
    k = qkv[:, :, 1].transpose(0, 2, 1, 3)
    v = qkv[:, :, 2].transpose(0, 2, 1, 3)
    scores = jnp.einsum("bhqd,bhkd->bhqk", q, k, precision=hp) / math.sqrt(dk)
    mask = jnp.tril(jnp.ones((S, S), dtype=bool))
    scores = jnp.where(mask, scores, -jnp.inf)
    attn = jax.nn.softmax(scores, axis=-1)
    out = jnp.einsum("bhqk,bhkd->bhqd", attn, v, precision=hp)
    out = out.transpose(0, 2, 1, 3).reshape(B, S, D)
    return jnp.einsum("bsd,od->bso", out, w_o, precision=hp)


if __name__ == "__main__":
    B, S, D, H = 2, 8, 32, 4

    key = jax.random.PRNGKey(0)
    kx, kqkv, ko, kx2 = jax.random.split(key, 4)
    x = jax.random.normal(kx, (B, S, D), dtype=jnp.float32)
    # cs336 Linear weights: (out_features, in_features), y = x @ W.T, no bias
    w_qkv = jax.random.normal(kqkv, (3 * D, D), dtype=jnp.float32) * (1.0 / math.sqrt(D))
    w_o = jax.random.normal(ko, (D, D), dtype=jnp.float32) * (1.0 / math.sqrt(D))

    ref = _reference(x, w_qkv, w_o, H)

    # 1) f32 compute path: tight check against the f32 reference.
    p32 = prepare_mhsa_params(w_qkv, w_o, compute_dtype=jnp.float32)
    out32 = jax.block_until_ready(multi_head_self_attention(x, *p32, H))
    assert out32.shape == (B, S, D)
    assert jnp.allclose(out32, ref, atol=2e-4, rtol=2e-4), "f32 path mismatch"

    # 2) bf16 performance path (bf16 MXU inputs, f32 accumulation).
    pbf = prepare_mhsa_params(w_qkv, w_o, compute_dtype=jnp.bfloat16)
    outbf = jax.block_until_ready(multi_head_self_attention(x, *pbf, H))
    assert outbf.shape == (B, S, D)
    assert jnp.allclose(outbf.astype(jnp.float32), ref, atol=1e-1, rtol=1e-1), \
        "bf16 path outside bf16 numerics envelope"

    # 3) multi-q-tile path: exercises the off-diagonal flash loop + causal skip.
    S2 = 16
    x2 = jax.random.normal(kx2, (1, S2, D), dtype=jnp.float32)
    ref2 = _reference(x2, w_qkv, w_o, H)
    out2 = jax.block_until_ready(
        multi_head_self_attention(x2, *p32, H, q_tile=8))
    assert jnp.allclose(out2, ref2, atol=2e-4, rtol=2e-4), "tiled path mismatch"

    print("KERNEL_OK")
</pallas_src>

<mosaic_0001>
module attributes {stable_mosaic.version = 11 : i64} {
  func.func @_rowmm_kernel(%arg0: i32, %arg1: i32, %arg2: i32, %arg3: memref<1x8x32xf32, #tpu.memory_space<vmem>>, %arg4: memref<32x96xf32, #tpu.memory_space<vmem>>, %arg5: memref<1x8x96xf32, #tpu.memory_space<vmem>>) attributes {dimension_semantics = [#tpu.dimension_semantics<parallel>, #tpu.dimension_semantics<parallel>, #tpu.dimension_semantics<parallel>], iteration_bounds = array<i64: 1, 2, 1>, scalar_prefetch = 0 : i64, scratch_operands = 0 : i64, tpu.core_type = #tpu.core_type<tc>, window_params = [{transform_indices = @transform_0, window_bounds = array<i64: 1, 8, 32>}, {pipeline_mode = #tpu.pipeline_mode<synchronous>, transform_indices = @transform_1, window_bounds = array<i64: 32, 96>}, {transform_indices = @transform_2, window_bounds = array<i64: 1, 8, 96>}]} {
    %c0 = arith.constant 0 : index
    %c0_0 = arith.constant 0 : index
    %c0_1 = arith.constant 0 : index
    %0 = vector.load %arg3[%c0, %c0_0, %c0_1] : memref<1x8x32xf32, #tpu.memory_space<vmem>>, vector<1x8x32xf32>
    %1 = vector.shape_cast %0 : vector<1x8x32xf32> to vector<8x32xf32>
    %c0_2 = arith.constant 0 : index
    %c0_3 = arith.constant 0 : index
    %2 = vector.load %arg4[%c0_2, %c0_3] : memref<32x96xf32, #tpu.memory_space<vmem>>, vector<32x96xf32>
    %cst = arith.constant dense<0.000000e+00> : vector<8x96xf32>
    %3 = tpu.matmul %1, %2, %cst {dimension_numbers = #tpu.dot_dimension_numbers<[1], [0], [0], [1], [0, 0, 1, 1], [], []>} : vector<8x32xf32>, vector<32x96xf32>, vector<8x96xf32> -> vector<8x96xf32>
    %c0_4 = arith.constant 0 : index
    %c0_5 = arith.constant 0 : index
    %c0_6 = arith.constant 0 : index
    %4 = vector.load %arg5[%c0_4, %c0_5, %c0_6] : memref<1x8x96xf32, #tpu.memory_space<vmem>>, vector<1x8x96xf32>
    %5 = vector.shape_cast %4 : vector<1x8x96xf32> to vector<8x96xf32>
    %6 = vector.shape_cast %3 : vector<8x96xf32> to vector<1x8x96xf32>
    tpu.vector_store %arg5[%c0_4, %c0_5, %c0_6], %6 {strides = array<i32>} : memref<1x8x96xf32, #tpu.memory_space<vmem>>, vector<1x8x96xf32>,
    return
  }
  func.func @transform_0(%arg0: i32, %arg1: i32, %arg2: i32) -> (i32, i32, i32) {
    %c0_i32 = arith.constant 0 : i32
    %c0_i32_0 = arith.constant 0 : i32
    return %arg1, %arg2, %c0_i32 : i32, i32, i32
  }
  func.func @transform_1(%arg0: i32, %arg1: i32, %arg2: i32) -> (i32, i32) {
    %c0_i32 = arith.constant 0 : i32
    %c0_i32_0 = arith.constant 0 : i32
    return %c0_i32, %arg0 : i32, i32
  }
  func.func @transform_2(%arg0: i32, %arg1: i32, %arg2: i32) -> (i32, i32, i32) {
    %c0_i32 = arith.constant 0 : i32
    return %arg1, %arg2, %arg0 : i32, i32, i32
  }
}

</mosaic_0001>

<llo_original>
// kernel: tpu_custom_call.1
$region0: #{tpu_custom_call.1}
  #allocation0 [shape = 'u32[]', space=smem, size = 0x4, offset = 0x4, fixed_abs, tag = 'smem constant byte address 0x4 - core index']
  #allocation1 [shape = 'u32[144,128]{1,0:T(1,128)}', space=vmem, size = 0x12000, scoped, tag = 'internal scratch']
  %s0 = inlined_call_operand.hbm [shape: f32[2,8,32], index: 0, kind: input, shape index: {}]
  %s1 = inlined_call_operand.hbm [shape: f32[32,96], index: 1, kind: input, shape index: {}]
  %s2 = inlined_call_operand.hbm [shape: f32[2,8,96], index: 2, kind: output, shape index: {}]
  %s3 = sld [smem:[#allocation0]]
  $region49: #{tpu_custom_call.1} parent=0
    _
  %s5 = ssub.s32 1, %s3
  %s6 = scalar_select 0, %s5, %s3
  $region1: #{tpu_custom_call.1} parent=0
    #allocation2 [shape = 'u8[8192]{0}', space=vmem, size = 0x2000, scoped, tag = 'input window, operand 0']
    #allocation3 [shape = 's32[2]{0}', space=sflag, size = 0x8, scoped, tag = 'scoped memory for tpu_custom_call.1']
    #allocation4 [shape = 's32[2]{0}', space=sflag, size = 0x8, scoped, tag = 'scoped memory for tpu_custom_call.1']
    #allocation5 [shape = 'u8[16384]{0}', space=vmem, size = 0x4000, scoped, tag = 'input window, operand 1, single buffered']
    #allocation6 [shape = 's32[1]{0}', space=sflag, size = 0x4, scoped, tag = 'scoped memory for tpu_custom_call.1']
    #allocation7 [shape = 'u8[8192]{0}', space=vmem, size = 0x2000, scoped, tag = 'output window, operand 0']
    %7 = vsyncpa [#allocation3], 0
    %s8 = scalar_lea.sflag [#allocation3], 1
    %9 = vsyncpa %s8, 0
    %10 = vsyncpa [#allocation6], 0
    %11 = vsyncpa [#allocation4], 0
    %s12 = scalar_lea.sflag [#allocation4], 1
    %13 = vsyncpa %s12, 0
    loop: start=0, step=1, limit=4
    $region2: #{tpu_custom_call.1} parent=1 // loop_pre_header
      _
    $region3: #{tpu_custom_call.1} parent=1 // loop_header
      %s15 = sphi 0, %s19
      %p16 = scmp.ge.s32.totalorder %s15, 4
      %s22 = sphi 0, %s41
      %s23 = sphi 0, %s37
      %s24 = sphi 0, %s33
      %s25 = sphi 0, %s22
      %s26 = sphi 0, %s23
      %s27 = sphi 0, %s24
      %s28 = sphi 0, %s25
      %s29 = sphi 0, %s26
      %s30 = sphi 0, %s27
      %s46 = sphi 0, %s48
      %s49 = sphi 0, %s46
      %s50 = sphi 0, %s49
      %s66 = sphi 0, %s50
      %s72 = sphi 0, %s74
      %s75 = sphi 0, %s72
      %s76 = sphi 0, %s75
      %s92 = sphi 0, %s76
      %s102 = sphi 0, %s104
      %s105 = sphi 0, %s102
      %s106 = sphi 0, %s105
      %s122 = sphi 0, %s106
    $region4: #{tpu_custom_call.1} parent=1 // loop_header_branch
      %18 = sbr.rel (%p16) target = $region8
    $region5: #{tpu_custom_call.1} parent=1 // loop_body
      %s20 = ssub.s32 %s15, 1
      %s21 = ssub.s32 %s15, 2
      %s31 = sadd.s32 1, %s24
      %p32 = scmp.ge.s32.totalorder %s31, 1
      %s33 = scalar_select %p32, 0, %s31
      %s34 = sadd.s32 1, %s23
      %s35 = scalar_select %p32, %s34, %s23
      %p36 = scmp.ge.s32.totalorder %s35, 2
      %s37 = scalar_select %p36, 0, %s35
      %s38 = sadd.s32 1, %s22
      %s39 = scalar_select %p36, %s38, %s22
      %p40 = scmp.ge.s32.totalorder %s39, 1
      %s41 = scalar_select %p40, 0, %s39
      %s42 = ssub.s32 %s23, %s37
      %s43 = ssub.s32 %s24, %s33
      %s44 = sor.u32 %s42, %s43
      %p45 = scmp.eq.s32.totalorder %s44, 0
      %s47 = sadd.s32 %s46, 1
      %s48 = scalar_select %p45, %s46, %s47
      %p51 = pneg %p45
      %p52 = scmp.eq.s32.totalorder %s15, 1
      %p53 = por %p51, %p52
      %p54 = scmp.ne.s32.totalorder %s46, %s49
      %p55 = scmp.eq.s32.totalorder %s15, 0
      %p56 = por %p54, %p55
      %p57 = scmp.ne.s32.totalorder %s46, %s49
      %p58 = scmp.eq.s32.totalorder %s20, 1
      %p59 = por %p57, %p58
      %p60 = scmp.ne.s32.totalorder %s49, %s50
      %p61 = scmp.eq.s32.totalorder %s20, 0
      %p62 = por %p60, %p61
      %p63 = scmp.ne.s32.totalorder %s49, %s50
      %p64 = scmp.eq.s32.totalorder %s21, 1
      %p65 = por %p63, %p64
      %p67 = scmp.ne.s32.totalorder %s50, %s66
      %p68 = scmp.eq.s32.totalorder %s21, 0
      %p69 = por %p67, %p68
      %s70 = ssub.s32 %s22, %s41
      %p71 = scmp.eq.s32.totalorder %s70, 0
      %s73 = sadd.s32 %s72, 1
      %s74 = scalar_select %p71, %s72, %s73
      %p77 = pneg %p71
      %p78 = scmp.eq.s32.totalorder %s15, 1
      %p79 = por %p77, %p78
      %p80 = scmp.ne.s32.totalorder %s72, %s75
      %p81 = scmp.eq.s32.totalorder %s15, 0
      %p82 = por %p80, %p81
      %p83 = scmp.ne.s32.totalorder %s72, %s75
      %p84 = scmp.eq.s32.totalorder %s20, 1
      %p85 = por %p83, %p84
      %p86 = scmp.ne.s32.totalorder %s75, %s76
      %p87 = scmp.eq.s32.totalorder %s20, 0
      %p88 = por %p86, %p87
      %p89 = scmp.ne.s32.totalorder %s75, %s76
      %p90 = scmp.eq.s32.totalorder %s21, 1
      %p91 = por %p89, %p90
      %p93 = scmp.ne.s32.totalorder %s76, %s92
      %p94 = scmp.eq.s32.totalorder %s21, 0
      %p95 = por %p93, %p94
      %s96 = ssub.s32 %s23, %s37
      %s97 = ssub.s32 %s24, %s33
      %s98 = sor.u32 %s96, %s97
      %s99 = ssub.s32 %s22, %s41
      %s100 = sor.u32 %s98, %s99
      %p101 = scmp.eq.s32.totalorder %s100, 0
      %s103 = sadd.s32 %s102, 1
      %s104 = scalar_select %p101, %s102, %s103
      %p107 = pneg %p101
      %p108 = scmp.eq.s32.totalorder %s15, 1
      %p109 = por %p107, %p108
      %p110 = scmp.ne.s32.totalorder %s102, %s105
      %p111 = scmp.eq.s32.totalorder %s15, 0
      %p112 = por %p110, %p111
      %p113 = scmp.ne.s32.totalorder %s102, %s105
      %p114 = scmp.eq.s32.totalorder %s20, 1
      %p115 = por %p113, %p114
      %p116 = scmp.ne.s32.totalorder %s105, %s106
      %p117 = scmp.eq.s32.totalorder %s20, 0
      %p118 = por %p116, %p117
      %p119 = scmp.ne.s32.totalorder %s105, %s106
      %p120 = scmp.eq.s32.totalorder %s21, 1
      %p121 = por %p119, %p120
      %p123 = scmp.ne.s32.totalorder %s106, %s122
      %p124 = scmp.eq.s32.totalorder %s21, 0
      %p125 = por %p123, %p124
      %p126 = scmp.le.s32.totalorder 1, %s15
      %p127 = scmp.lt.s32.totalorder %s15, 3
      %p128 = pnand %p126, %p127
      %p129 = pneg %p128
      // Predicated region
      $region9: #{tpu_custom_call.1} parent=5 // pred_check
        _
      $region10: #{tpu_custom_call.1} parent=5 // pred_check_branch
        %131 = sbr.rel (%p128) target = $region12
      $region11: #{tpu_custom_call.1} parent=5 // pred_region
        %s132 = ssub.s32 %s15, 1
        // Predicated region
        $region13: #{tpu_custom_call.1} parent=11 // pred_check
          %p133 = pneg %p88
        $region14: #{tpu_custom_call.1} parent=11 // pred_check_branch
          %135 = sbr.rel (%p133) target = $region16
        $region15: #{tpu_custom_call.1} parent=11 // pred_region
          %s137 = ssub.s32 512, 512
          %138 = vsyncadd [#allocation6], %s137
          %s139 = smul.addr %s25, 128
          %s140 = scalar_lea.hbm %s1, %s139
          %s141 = sshll.u32 [#allocation5], 4
          %s142 = int_to_ptr.vmem [resolvable:$true] %s141
          %147 = dma.hbm_to_vmem [thread:$0]  %s140, 512, %s142, [#allocation6], 128, 128, 8
        $region16: #{tpu_custom_call.1} parent=11 // pred_fallthru
          _
      $region12: #{tpu_custom_call.1} parent=5 // pred_fallthru
        _
      %p148 = scmp.lt.s32.totalorder %s15, 2
      // Predicated region
      $region17: #{tpu_custom_call.1} parent=5 // pred_check
        %p149 = pneg %p148
      $region18: #{tpu_custom_call.1} parent=5 // pred_check_branch
        %151 = sbr.rel (%p149) target = $region20
      $region19: #{tpu_custom_call.1} parent=5 // pred_region
        // Predicated region
        $region21: #{tpu_custom_call.1} parent=19 // pred_check
          %p152 = pneg %p56
        $region22: #{tpu_custom_call.1} parent=19 // pred_check_branch
          %154 = sbr.rel (%p152) target = $region24
        $region23: #{tpu_custom_call.1} parent=19 // pred_region
          %s155 = sand.u32 %s46, 1
          %s156 = scalar_lea.sflag [#allocation3], %s155
          %s157 = sand.u32 %s46, 1
          %s158 = smul.addr %s157, 8
          %s159 = scalar_lea.vmem [#allocation2], %s158
          %s161 = ssub.s32 128, 128
          %162 = vsyncadd %s156, %s161
          %s163 = sadd.s32 %s24, %s23
          %s164 = smul.addr %s163, 128
          %s165 = scalar_lea.hbm %s0, %s164
          %s167 = sshll.u32 %s159, 4
          %s168 = int_to_ptr.vmem [resolvable:$true] %s167
          %170 = dma.hbm_to_vmem [thread:$0]  %s165, 128, %s168, %s156
        $region24: #{tpu_custom_call.1} parent=19 // pred_fallthru
          _
      $region20: #{tpu_custom_call.1} parent=5 // pred_fallthru
        _
      %p171 = scmp.le.s32.totalorder 1, %s15
      %p172 = scmp.lt.s32.totalorder %s15, 3
      %p173 = pnand %p171, %p172
      %p174 = pneg %p173
      // Predicated region
      $region25: #{tpu_custom_call.1} parent=5 // pred_check
        _
      $region26: #{tpu_custom_call.1} parent=5 // pred_check_branch
        %176 = sbr.rel (%p173) target = $region28
      $region27: #{tpu_custom_call.1} parent=5 // pred_region
        %s177 = ssub.s32 %s15, 1
        %s178 = sand.u32 %s49, 1
        %s179 = scalar_lea.sflag [#allocation3], %s178
        %s180 = sand.u32 %s49, 1
        %s181 = smul.addr %s180, 8
        %s182 = scalar_lea.vmem [#allocation2], %s181
        // Predicated region
        $region29: #{tpu_custom_call.1} parent=27 // pred_check
          %p183 = pneg %p62
        $region30: #{tpu_custom_call.1} parent=27 // pred_check_branch
          %185 = sbr.rel (%p183) target = $region32
        $region31: #{tpu_custom_call.1} parent=27 // pred_region
          %186 = dma.done %s179, 128
        $region32: #{tpu_custom_call.1} parent=27 // pred_fallthru
          _
        // Predicated region
        $region33: #{tpu_custom_call.1} parent=27 // pred_check
          %p187 = pneg %p88
        $region34: #{tpu_custom_call.1} parent=27 // pred_check_branch
          %189 = sbr.rel (%p187) target = $region36
        $region35: #{tpu_custom_call.1} parent=27 // pred_region
          %190 = dma.done [#allocation6], 512
        $region36: #{tpu_custom_call.1} parent=27 // pred_fallthru
          _
        %s191 = sand.u32 %s49, 1
        %s192 = scalar_lea.sflag [#allocation3], %s191
        %s193 = sand.u32 %s49, 1
        %s194 = smul.addr %s193, 8
        %s195 = scalar_lea.vmem [#allocation2], %s194
        %p196 = pneg %p62
        %p197 = pneg %p59
        %p198 = pneg %p88
        %p199 = pneg %p85
        %p200 = pneg %p118
        %p201 = pneg %p115
        %s202 = sand.u32 %s105, 1
        %s203 = scalar_lea.sflag [#allocation4], %s202
        %s204 = sand.u32 %s105, 1
        %s205 = smul.addr %s204, 8
        %s206 = scalar_lea.vmem [#allocation7], %s205
        %v207 = vld [vmem:[%s182] sm:$0xff]
        %v208 = vld [vmem:[#allocation5] sm:$0xff]
        %v209 = vld [vmem:[#allocation5 + $0x8] sm:$0xff]
        %v210 = vld [vmem:[#allocation5 + $0x10] sm:$0xff]
        %v211 = vld [vmem:[#allocation5 + $0x18] sm:$0xff]
        %vm212 = vcmask 261120
        %v214 = vsel %vm212, %v207, 0
        %216 = vmatprep.subr.mxu0 0.0
        %217 = vmatpush1.msra.mxu0 %v208
        %218 = vmatprep.subr.mxu0 0.0
        %219 = vmatpush1.msra.mxu0 %v209
        %220 = vmatprep.subr.mxu0 0.0
        %221 = vmatpush1.msra.mxu0 %v210
        %222 = vmatprep.subr.mxu0 0.0
        %223 = vmatpush1.msra.mxu0 %v211
        %224 = vmatprep.subr.mxu0 0.0
        %225 = vmatpush1.msra.mxu0 0.0
        %226 = vmatprep.subr.mxu0 0.0
        %227 = vmatpush1.msra.mxu0 0.0
        %228 = vmatprep.subr.mxu0 0.0
        %229 = vmatpush1.msra.mxu0 0.0
        %230 = vmatprep.subr.mxu0 0.0
        %231 = vmatpush1.msra.mxu0 0.0
        %232 = vmatprep.subr.mxu0 0.0
        %233 = vmatpush1.msra.mxu0 0.0
        %234 = vmatprep.subr.mxu0 0.0
        %235 = vmatpush1.msra.mxu0 0.0
        %236 = vmatprep.subr.mxu0 0.0
        %237 = vmatpush1.msra.mxu0 0.0
        %238 = vmatprep.subr.mxu0 0.0
        %239 = vmatpush1.msra.mxu0 0.0
        %240 = vmatprep.subr.mxu0 0.0
        %241 = vmatpush1.msra.mxu0 0.0
        %242 = vmatprep.subr.mxu0 0.0
        %243 = vmatpush1.msra.mxu0 0.0
        %244 = vmatprep.subr.mxu0 0.0
        %245 = vmatpush1.msra.mxu0 0.0
        %246 = vmatprep.subr.mxu0 0.0
        %247 = vmatpush1.msra.mxu0 0.0
        %248 = vmatprep.subr.mxu0 0.0
        %249 = vmatpush1.msra.mxu0 0.0
        %250 = vmatprep.subr.mxu0 0.0
        %251 = vmatpush1.msra.mxu0 0.0
        %252 = vmatprep.subr.mxu0 0.0
        %253 = vmatpush1.msra.mxu0 0.0
        %254 = vmatprep.subr.mxu0 0.0
        %255 = vmatpush1.msra.mxu0 0.0
        %256 = vmatprep.subr.mxu0 0.0
        %257 = vmatpush1.msra.mxu0 0.0
        %258 = vmatprep.subr.mxu0 0.0
        %259 = vmatpush1.msra.mxu0 0.0
        %260 = vmatprep.subr.mxu0 0.0
        %261 = vmatpush1.msra.mxu0 0.0
        %262 = vmatprep.subr.mxu0 0.0
        %263 = vmatpush1.msra.mxu0 0.0
        %264 = vmatprep.subr.mxu0 0.0
        %265 = vmatpush1.msra.mxu0 0.0
        %266 = vmatprep.subr.mxu0 0.0
        %267 = vmatpush1.msra.mxu0 0.0
        %268 = vmatprep.subr.mxu0 0.0
        %269 = vmatpush1.msra.mxu0 0.0
        %270 = vmatprep.subr.mxu0 0.0
        %271 = vmatpush1.msra.mxu0 0.0
        %272 = vmatprep.subr.mxu0 0.0
        %273 = vmatpush1.msra.mxu0 0.0
        %274 = vmatprep.subr.mxu0 0.0
        %275 = vmatpush1.msra.mxu0 0.0
        %276 = vmatprep.subr.mxu0 0.0
        %277 = vmatpush1.msra.mxu0 0.0
        %278 = vmatprep.subr.mxu0 0.0
        %279 = vmatpush1.msra.mxu0 0.0
        %280 = vmatprep.mubr.f32.mxu0 0.0
        %281 = vmatmul.mubr.f32.gmra.mrb[0].mxu0 %v214
        %v282 = vpop.f32.mrb[0].mxu0
        %v283 = vadd.f32 0.0, %v282
        %v284 = vpop.f32.mrb[0].mxu0
        %285 = vdwg.mxu0
        %vm286 = vcmask 785408
        %287 = vst.msk [vmem:[%s206] sm:$0xff] %vm286, %v283
        %s288 = sand.u32 %s105, 1
        %s289 = scalar_lea.sflag [#allocation4], %s288
        %s290 = sand.u32 %s105, 1
        %s291 = smul.addr %s290, 8
        %s292 = scalar_lea.vmem [#allocation7], %s291
        // Predicated region
        $region37: #{tpu_custom_call.1} parent=27 // pred_check
          %p293 = pneg %p115
        $region38: #{tpu_custom_call.1} parent=27 // pred_check_branch
          %295 = sbr.rel (%p293) target = $region40
        $region39: #{tpu_custom_call.1} parent=27 // pred_region
          %s297 = ssub.s32 128, 128
          %298 = vsyncadd %s289, %s297
          %s299 = sadd.s32 %s25, %s27
          %s300 = sadd.s32 %s299, %s26
          %s301 = smul.addr %s300, 128
          %s302 = scalar_lea.hbm %s2, %s301
          %s304 = sshll.u32 %s292, 4
          %s305 = int_to_ptr.vmem [resolvable:$true] %s304
          %307 = dma.vmem_to_hbm [thread:$0]  %s305, 128, %s302, %s289
        $region40: #{tpu_custom_call.1} parent=27 // pred_fallthru
          _
      $region28: #{tpu_custom_call.1} parent=5 // pred_fallthru
        _
      %p308 = scmp.le.s32.totalorder 2, %s15
      // Predicated region
      $region41: #{tpu_custom_call.1} parent=5 // pred_check
        %p309 = pneg %p308
      $region42: #{tpu_custom_call.1} parent=5 // pred_check_branch
        %311 = sbr.rel (%p309) target = $region44
      $region43: #{tpu_custom_call.1} parent=5 // pred_region
        %s312 = ssub.s32 %s15, 2
        // Predicated region
        $region45: #{tpu_custom_call.1} parent=43 // pred_check
          %p313 = pneg %p121
        $region46: #{tpu_custom_call.1} parent=43 // pred_check_branch
          %315 = sbr.rel (%p313) target = $region48
        $region47: #{tpu_custom_call.1} parent=43 // pred_region
          %s316 = sand.u32 %s106, 1
          %s317 = scalar_lea.sflag [#allocation4], %s316
          %s318 = sand.u32 %s106, 1
          %s319 = smul.addr %s318, 8
          %s320 = scalar_lea.vmem [#allocation7], %s319
          %321 = dma.done %s317, 128
        $region48: #{tpu_custom_call.1} parent=43 // pred_fallthru
          _
      $region44: #{tpu_custom_call.1} parent=5 // pred_fallthru
        _
    $region6: #{tpu_custom_call.1} parent=1 // loop_footer
      %s19 = sadd.s32 1, %s15
    $region7: #{tpu_custom_call.1} parent=1 // loop_footer_branch
      %14 = sbr.rel target = $region3
    $region8: #{tpu_custom_call.1} parent=1 // loop_exit
      _
    %322 = vsyncpa [#allocation3], 1
    %s323 = scalar_lea.sflag [#allocation3], 1
    %324 = vsyncpa %s323, 1
    %325 = vsyncpa [#allocation6], 1
    %326 = vsyncpa [#allocation4], 1
    %s327 = scalar_lea.sflag [#allocation4], 1
    %328 = vsyncpa %s327, 1

</llo_original>
